<compile_context>
chip_gen: v7x
topology: tpu7x:2x2x1
jax: 0.10.0
libtpu: 0.0.40
codegen_flags: <defaults>
</compile_context>

<pallas_src>
import functools

import jax
import jax.numpy as jnp
from jax.experimental import pallas as pl
from jax.experimental.pallas import tpu as pltpu


# ----------------------------------------------------------------------------
# Helpers
# ----------------------------------------------------------------------------

def _round_up(x, m):
    return ((x + m - 1) // m) * m


def _default_vmem_limit():
    """Chip-aware VMEM limit: ~75% of physical, capped for headroom."""
    cap = 64 * 1024 * 1024  # conservative default (v7x per-TC physical)
    try:
        info = pltpu.get_tpu_info()
        cap = int(getattr(info, "vmem_capacity_bytes", cap) or cap)
    except Exception:
        pass
    return max(32 * 1024 * 1024, min(int(cap * 3 // 4), 100 * 1024 * 1024))


_CP = pltpu.CompilerParams(
    dimension_semantics=("parallel",),
    vmem_limit_bytes=_default_vmem_limit(),
)


def _tile_rows(M, tm=512):
    """Row tile (multiple of 16 for bf16 sublanes) and padded row count.

    Clamps so the row grid has >= 2 parallel steps when M allows, to keep
    both v7x TensorCores fed."""
    full = _round_up(max(M, 16), 16)
    tm = min(tm, full)
    if tm == full and M > 16:
        tm = _round_up(pl.cdiv(M, 2), 16)
    Mp = _round_up(M, tm)
    return tm, Mp


def _pad_rows(x, rows):
    M = x.shape[0]
    if rows == M:
        return x
    pad = [(0, rows - M)] + [(0, 0)] * (x.ndim - 1)
    return jnp.pad(x, pad)


# ----------------------------------------------------------------------------
# Pallas kernels
# ----------------------------------------------------------------------------

def _value_proj_kernel(x_ref, w_ref, b_ref, keep_ref, o_ref):
    """value = (x @ w + b) * keep   (keep = 1 - padding_mask, fused masked_fill)."""
    y = jnp.dot(x_ref[...], w_ref[...], preferred_element_type=jnp.float32)
    y = (y + b_ref[...]) * keep_ref[...]
    o_ref[...] = y.astype(o_ref.dtype)


def _off_aw_kernel(x_ref, w_ref, b_ref, off_ref, aw_ref, *, off_n, n_heads, lp):
    """Fused sampling-offset + attention-weight projection.

    y = x @ [off_w | aw_w] + [off_b | aw_b]; the aw part gets a per-head
    softmax over the (n_levels*n_points) group, written directly into aw_ref
    slices (no concatenate temp)."""
    y = jnp.dot(x_ref[...], w_ref[...], preferred_element_type=jnp.float32)
    y = y + b_ref[...]
    off_ref[...] = y[:, :off_n].astype(off_ref.dtype)
    for h in range(n_heads):  # static unroll, H is small
        a = y[:, off_n + h * lp: off_n + (h + 1) * lp]
        m = jnp.max(a, axis=-1, keepdims=True)
        e = jnp.exp(a - m)                                    # EUP
        s = jnp.sum(e, axis=-1, keepdims=True)
        aw_ref[:, h * lp:(h + 1) * lp] = (
            e * pl.reciprocal(s, approx=True)).astype(aw_ref.dtype)


def _attn_out_ffn_kernel(attn_ref, res_ref, wo_ref, bo_ref, g1_ref, be1_ref,
                         w1_ref, b1_ref, w2_ref, b2_ref, g2_ref, be2_ref,
                         o_ref, *, eps):
    """Fused: LN1(attn @ Wo + bo + res) -> relu(.@W1+b1) -> LN2(.@W2+b2 + s1).

    The (tm, d_ffn) hidden and the post-norm1 activation never leave VMEM."""
    # output projection + residual + LayerNorm1
    s = jnp.dot(attn_ref[...], wo_ref[...], preferred_element_type=jnp.float32)
    s = s + bo_ref[...] + res_ref[...].astype(jnp.float32)
    mean = jnp.mean(s, axis=-1, keepdims=True)
    c = s - mean
    var = jnp.mean(c * c, axis=-1, keepdims=True)
    s1 = (c * jax.lax.rsqrt(var + eps)) * g1_ref[...] + be1_ref[...]

    # FFN: linear1 + ReLU (hidden stays on-chip)
    h = jnp.dot(s1.astype(jnp.bfloat16), w1_ref[...],
                preferred_element_type=jnp.float32)
    h = jnp.maximum(h + b1_ref[...], 0.0)

    # linear2 + residual + LayerNorm2
    y = jnp.dot(h.astype(jnp.bfloat16), w2_ref[...],
                preferred_element_type=jnp.float32)
    y = y + b2_ref[...] + s1
    mean2 = jnp.mean(y, axis=-1, keepdims=True)
    c2 = y - mean2
    var2 = jnp.mean(c2 * c2, axis=-1, keepdims=True)
    o_ref[...] = ((c2 * jax.lax.rsqrt(var2 + eps)) * g2_ref[...]
                  + be2_ref[...]).astype(o_ref.dtype)


# ----------------------------------------------------------------------------
# Pallas wrappers (inputs are already bf16 and row-padded to Mp)
# ----------------------------------------------------------------------------

def pallas_value_proj(x_p, w, b, keep_p, *, tm):
    Mp, K = x_p.shape
    N = w.shape[1]
    return pl.pallas_call(
        _value_proj_kernel,
        out_shape=jax.ShapeDtypeStruct((Mp, N), jnp.bfloat16),
        grid_spec=pltpu.PrefetchScalarGridSpec(
            num_scalar_prefetch=0,
            grid=(Mp // tm,),
            in_specs=[
                pl.BlockSpec((tm, K), lambda i: (i, 0)),
                pl.BlockSpec((K, N), lambda i: (0, 0)),
                pl.BlockSpec((1, N), lambda i: (0, 0)),
                pl.BlockSpec((tm, 1), lambda i: (i, 0)),
            ],
            out_specs=pl.BlockSpec((tm, N), lambda i: (i, 0)),
        ),
        compiler_params=_CP,
    )(x_p, w, b, keep_p)


def pallas_off_aw_proj(x_p, w_cat, b_cat, *, off_n, n_heads, lp, tm):
    Mp, K = x_p.shape
    n_tot = w_cat.shape[1]
    aw_n = n_tot - off_n
    off, aw = pl.pallas_call(
        functools.partial(_off_aw_kernel, off_n=off_n, n_heads=n_heads, lp=lp),
        out_shape=(jax.ShapeDtypeStruct((Mp, off_n), jnp.float32),
                   jax.ShapeDtypeStruct((Mp, aw_n), jnp.float32)),
        grid_spec=pltpu.PrefetchScalarGridSpec(
            num_scalar_prefetch=0,
            grid=(Mp // tm,),
            in_specs=[
                pl.BlockSpec((tm, K), lambda i: (i, 0)),
                pl.BlockSpec((K, n_tot), lambda i: (0, 0)),
                pl.BlockSpec((1, n_tot), lambda i: (0, 0)),
            ],
            out_specs=(pl.BlockSpec((tm, off_n), lambda i: (i, 0)),
                       pl.BlockSpec((tm, aw_n), lambda i: (i, 0))),
        ),
        compiler_params=_CP,
    )(x_p, w_cat, b_cat)
    return off, aw


def pallas_attn_out_ffn(attn_p, res_p, params, *, tm, eps=1e-5):
    Mp, D = attn_p.shape
    dff = params["lin1_w"].shape[1]
    row = pl.BlockSpec((tm, D), lambda i: (i, 0))

    def full(shape):
        return pl.BlockSpec(shape, lambda i: (0, 0))

    return pl.pallas_call(
        functools.partial(_attn_out_ffn_kernel, eps=eps),
        out_shape=jax.ShapeDtypeStruct((Mp, D), jnp.float32),
        grid_spec=pltpu.PrefetchScalarGridSpec(
            num_scalar_prefetch=0,
            grid=(Mp // tm,),
            in_specs=[
                row,                              # attention output
                row,                              # residual (src)
                full((D, D)), full((1, D)),       # out_proj
                full((1, D)), full((1, D)),       # norm1 gamma / beta
                full((D, dff)), full((1, dff)),   # linear1
                full((dff, D)), full((1, D)),     # linear2
                full((1, D)), full((1, D)),       # norm2 gamma / beta
            ],
            out_specs=pl.BlockSpec((tm, D), lambda i: (i, 0)),
        ),
        compiler_params=_CP,
    )(attn_p, res_p,
      params["out_w"], params["out_b"],
      params["ln1_g"], params["ln1_b"],
      params["lin1_w"], params["lin1_b"],
      params["lin2_w"], params["lin2_b"],
      params["ln2_g"], params["ln2_b"])


# ----------------------------------------------------------------------------
# Deformable attention sampling core (JAX glue)
# ----------------------------------------------------------------------------
# TODO(synk): the data-dependent bilinear gather (torch F.grid_sample,
# align_corners=False, padding_mode='zeros') stays in plain JAX; a Pallas
# scalar-prefetch / VMEM-resident gather kernel chained into the out_proj+LN1
# kernel is the remaining structural win.

def _grid_sample_bilinear(v, grid):
    """v: (B, H, W, D) bf16/f32; grid: (B, Lq, P, 2) in [-1,1] (x=width, y=height)."""
    B, H, W, D = v.shape
    gx, gy = grid[..., 0], grid[..., 1]
    x = ((gx + 1.0) * W - 1.0) * 0.5
    y = ((gy + 1.0) * H - 1.0) * 0.5
    x0f, y0f = jnp.floor(x), jnp.floor(y)
    x1f, y1f = x0f + 1.0, y0f + 1.0
    wx1, wy1 = x - x0f, y - y0f
    wx0, wy0 = 1.0 - wx1, 1.0 - wy1

    flat = v.reshape(B, H * W, D)
    bidx = jnp.arange(B)[:, None, None]

    def gather(xf, yf):
        valid = ((xf >= 0) & (xf <= W - 1) & (yf >= 0) & (yf <= H - 1))
        xi = jnp.clip(xf, 0, W - 1).astype(jnp.int32)
        yi = jnp.clip(yf, 0, H - 1).astype(jnp.int32)
        g = flat[bidx, yi * W + xi].astype(jnp.float32)     # (B, Lq, P, D)
        return g * valid[..., None].astype(jnp.float32)

    v00 = gather(x0f, y0f)
    v10 = gather(x1f, y0f)
    v01 = gather(x0f, y1f)
    v11 = gather(x1f, y1f)
    out = (v00 * (wx0 * wy0)[..., None] + v10 * (wx1 * wy0)[..., None]
           + v01 * (wx0 * wy1)[..., None] + v11 * (wx1 * wy1)[..., None])
    return out                                              # (B, Lq, P, D) f32


def ms_deform_attn_core(value, spatial_shapes, sampling_locations, attention_weights):
    """value: (N, Len_in, H, Dh); sampling_locations: (N, Lq, H, L, P, 2);
       attention_weights: (N, Lq, H, L, P).  Returns (N, Lq, H*Dh) f32.

    Accumulates the weighted sum per level (no 5-D stacked intermediate)."""
    N, _, Hh, Dh = value.shape
    _, Lq, _, L, P, _ = sampling_locations.shape
    w = attention_weights.transpose(0, 2, 1, 3, 4).reshape(N * Hh, Lq, L, P)
    out = jnp.zeros((N * Hh, Lq, Dh), jnp.float32)
    start = 0
    for lid, (Hl, Wl) in enumerate(spatial_shapes):
        v = value[:, start:start + Hl * Wl]                       # (N, Hl*Wl, Hh, Dh)
        start += Hl * Wl
        v = v.transpose(0, 2, 1, 3).reshape(N * Hh, Hl, Wl, Dh)   # (N*Hh, Hl, Wl, Dh)
        loc = sampling_locations[:, :, :, lid]                    # (N, Lq, Hh, P, 2)
        loc = loc.transpose(0, 2, 1, 3, 4).reshape(N * Hh, Lq, P, 2)
        grid = 2.0 * loc - 1.0
        sampled = _grid_sample_bilinear(v, grid)                  # (N*Hh, Lq, P, Dh)
        out = out + jnp.einsum('blpd,blp->bld', sampled, w[:, :, lid])
    out = out.reshape(N, Hh, Lq, Dh).transpose(0, 2, 1, 3).reshape(N, Lq, Hh * Dh)
    return out


# ----------------------------------------------------------------------------
# Encoder layer forward
# ----------------------------------------------------------------------------

def encoder_layer_forward(params, src, pos, reference_points, spatial_shapes,
                          padding_mask, n_heads, n_levels, n_points, *, tm=512):
    N, Len, D = src.shape
    Dh = D // n_heads
    M = N * Len
    tm, Mp = _tile_rows(M, tm)

    # Single cast + pad pass per activation stream.
    src2d = src.reshape(M, D)
    src_p = _pad_rows(src2d.astype(jnp.bfloat16), Mp)              # residual + value-proj input
    q_p = _pad_rows((src + pos).reshape(M, D).astype(jnp.bfloat16), Mp)  # with_pos_embed

    # --- MSDeformAttn ---
    if padding_mask is None:
        keep_p = jnp.ones((Mp, 1), jnp.float32)
    else:
        keep = 1.0 - padding_mask.reshape(M, 1).astype(jnp.float32)
        keep_p = _pad_rows(keep, Mp)

    # value projection with masked_fill fused (bf16 writeback halves HBM traffic)
    value = pallas_value_proj(src_p, params["val_w"], params["val_b"], keep_p, tm=tm)
    value = value[:M].reshape(N, Len, n_heads, Dh)

    # offsets + attention weights: one fused matmul + per-head softmax epilogue
    lp = n_levels * n_points
    off_n = n_heads * lp * 2
    off, aw = pallas_off_aw_proj(q_p, params["offaw_w"], params["offaw_b"],
                                 off_n=off_n, n_heads=n_heads, lp=lp, tm=tm)
    off = off[:M].reshape(N, Len, n_heads, n_levels, n_points, 2)
    aw = aw[:M].reshape(N, Len, n_heads, n_levels, n_points)

    ss = jnp.asarray(spatial_shapes, jnp.float32)                  # (L, 2) = (H, W)
    offset_normalizer = jnp.stack([ss[:, 1], ss[:, 0]], axis=-1)   # (L, 2) = (W, H)
    sampling_locations = (reference_points[:, :, None, :, None, :]
                          + off / offset_normalizer[None, None, None, :, None, :])

    attn = ms_deform_attn_core(value, spatial_shapes, sampling_locations, aw)
    attn_p = _pad_rows(attn.reshape(M, D).astype(jnp.bfloat16), Mp)

    # out_proj + residual + norm1 + linear1 + ReLU + linear2 + residual + norm2
    # (dropout1/2/3 = identity), all in one kernel.
    out = pallas_attn_out_ffn(attn_p, src_p, params, tm=tm)
    return out[:M].reshape(N, Len, D)


# ----------------------------------------------------------------------------
# Deterministic parameter init (synthetic; shapes follow the module __init__).
# Weights are stored bf16, biases / LN params pre-shaped (1, N) f32, and the
# offset|attention-weight projections pre-concatenated — no per-forward
# cast/reshape/concat passes over the weights.
# ----------------------------------------------------------------------------

def init_params(key, d_model, d_ffn, n_heads, n_levels, n_points):
    keys = jax.random.split(key, 6)

    def lin(k, fan_in, fan_out):
        kw, kb = jax.random.split(k)
        w = (jax.random.normal(kw, (fan_in, fan_out), jnp.float32) * 0.05)
        b = (jax.random.normal(kb, (fan_out,), jnp.float32) * 0.05)
        return w.astype(jnp.bfloat16), b.reshape(1, fan_out)

    p = {}
    off_w, off_b = lin(keys[0], d_model, n_heads * n_levels * n_points * 2)
    aw_w, aw_b = lin(keys[1], d_model, n_heads * n_levels * n_points)
    p["offaw_w"] = jnp.concatenate([off_w, aw_w], axis=1)
    p["offaw_b"] = jnp.concatenate([off_b, aw_b], axis=1)
    p["val_w"], p["val_b"] = lin(keys[2], d_model, d_model)
    p["out_w"], p["out_b"] = lin(keys[3], d_model, d_model)
    p["lin1_w"], p["lin1_b"] = lin(keys[4], d_model, d_ffn)
    p["lin2_w"], p["lin2_b"] = lin(keys[5], d_ffn, d_model)
    p["ln1_g"] = jnp.ones((1, d_model), jnp.float32)
    p["ln1_b"] = jnp.zeros((1, d_model), jnp.float32)
    p["ln2_g"] = jnp.ones((1, d_model), jnp.float32)
    p["ln2_b"] = jnp.zeros((1, d_model), jnp.float32)
    return p


# ----------------------------------------------------------------------------

if __name__ == "__main__":
    d_model, d_ffn = 32, 64
    n_heads, n_levels, n_points = 4, 2, 2
    spatial_shapes = [(8, 8), (4, 4)]               # per-level (H, W)
    N = 2
    Len = sum(h * w for h, w in spatial_shapes)     # 80 tokens

    key = jax.random.PRNGKey(0)
    k_param, k_src, k_pos, k_ref, k_mask = jax.random.split(key, 5)

    params = init_params(k_param, d_model, d_ffn, n_heads, n_levels, n_points)

    src = jax.random.normal(k_src, (N, Len, d_model), jnp.float32)
    pos = jax.random.normal(k_pos, (N, Len, d_model), jnp.float32)
    reference_points = jax.random.uniform(k_ref, (N, Len, n_levels, 2), jnp.float32)
    padding_mask = jax.random.uniform(k_mask, (N, Len)) < 0.1      # bool, like torch mask

    out = encoder_layer_forward(params, src, pos, reference_points, spatial_shapes,
                                padding_mask, n_heads, n_levels, n_points)
    out = jax.block_until_ready(out)

    assert out.shape == (N, Len, d_model)
    assert bool(jnp.all(jnp.isfinite(out)))
    print("KERNEL_OK")
</pallas_src>

<mosaic_0001>
module attributes {stable_mosaic.version = 11 : i64} {
  func.func @_value_proj_kernel(%arg0: i32, %arg1: memref<80x32xbf16, #tpu.memory_space<vmem>>, %arg2: memref<32x32xbf16, #tpu.memory_space<vmem>>, %arg3: memref<1x32xf32, #tpu.memory_space<vmem>>, %arg4: memref<80x1xf32, #tpu.memory_space<vmem>>, %arg5: memref<80x32xbf16, #tpu.memory_space<vmem>>) attributes {dimension_semantics = [#tpu.dimension_semantics<parallel>], iteration_bounds = array<i64: 2>, scalar_prefetch = 0 : i64, scratch_operands = 0 : i64, tpu.core_type = #tpu.core_type<tc>, window_params = [{transform_indices = @transform_0, window_bounds = array<i64: 80, 32>}, {pipeline_mode = #tpu.pipeline_mode<synchronous>, transform_indices = @transform_1, window_bounds = array<i64: 32, 32>}, {pipeline_mode = #tpu.pipeline_mode<synchronous>, transform_indices = @transform_2, window_bounds = array<i64: 1, 32>}, {transform_indices = @transform_3, window_bounds = array<i64: 80, 1>}, {transform_indices = @transform_4, window_bounds = array<i64: 80, 32>}]} {
    %c0 = arith.constant 0 : index
    %c0_0 = arith.constant 0 : index
    %0 = vector.load %arg1[%c0, %c0_0] : memref<80x32xbf16, #tpu.memory_space<vmem>>, vector<80x32xbf16>
    %c0_1 = arith.constant 0 : index
    %c0_2 = arith.constant 0 : index
    %1 = vector.load %arg2[%c0_1, %c0_2] : memref<32x32xbf16, #tpu.memory_space<vmem>>, vector<32x32xbf16>
    %cst = arith.constant dense<0.000000e+00> : vector<80x32xf32>
    %2 = tpu.matmul %0, %1, %cst {dimension_numbers = #tpu.dot_dimension_numbers<[1], [0], [0], [1], [0, 0, 1, 1], [], []>} : vector<80x32xbf16>, vector<32x32xbf16>, vector<80x32xf32> -> vector<80x32xf32>
    %c0_3 = arith.constant 0 : index
    %c0_4 = arith.constant 0 : index
    %3 = vector.load %arg3[%c0_3, %c0_4] : memref<1x32xf32, #tpu.memory_space<vmem>>, vector<1x32xf32>
    %4 = vector.broadcast %3 : vector<1x32xf32> to vector<80x32xf32>
    %5 = arith.addf %2, %4 : vector<80x32xf32>
    %c0_5 = arith.constant 0 : index
    %c0_6 = arith.constant 0 : index
    %6 = vector.load %arg4[%c0_5, %c0_6] : memref<80x1xf32, #tpu.memory_space<vmem>>, vector<80x1xf32>
    %7 = vector.broadcast %6 : vector<80x1xf32> to vector<80x32xf32>
    %8 = arith.mulf %5, %7 : vector<80x32xf32>
    %9 = arith.truncf %8 : vector<80x32xf32> to vector<80x32xbf16>
    %c0_7 = arith.constant 0 : index
    %c0_8 = arith.constant 0 : index
    %10 = vector.load %arg5[%c0_7, %c0_8] : memref<80x32xbf16, #tpu.memory_space<vmem>>, vector<80x32xbf16>
    tpu.vector_store %arg5[%c0_7, %c0_8], %9 {strides = array<i32>} : memref<80x32xbf16, #tpu.memory_space<vmem>>, vector<80x32xbf16>,
    return
  }
  func.func @transform_0(%arg0: i32) -> (i32, i32) {
    %c0_i32 = arith.constant 0 : i32
    %c0_i32_0 = arith.constant 0 : i32
    return %arg0, %c0_i32 : i32, i32
  }
  func.func @transform_1(%arg0: i32) -> (i32, i32) {
    %c0_i32 = arith.constant 0 : i32
    %c0_i32_0 = arith.constant 0 : i32
    %c0_i32_1 = arith.constant 0 : i32
    return %c0_i32, %c0_i32_0 : i32, i32
  }
  func.func @transform_2(%arg0: i32) -> (i32, i32) {
    %c0_i32 = arith.constant 0 : i32
    %c0_i32_0 = arith.constant 0 : i32
    %c0_i32_1 = arith.constant 0 : i32
    return %c0_i32, %c0_i32_0 : i32, i32
  }
  func.func @transform_3(%arg0: i32) -> (i32, i32) {
    %c0_i32 = arith.constant 0 : i32
    %c0_i32_0 = arith.constant 0 : i32
    return %arg0, %c0_i32 : i32, i32
  }
  func.func @transform_4(%arg0: i32) -> (i32, i32) {
    %c0_i32 = arith.constant 0 : i32
    %c0_i32_0 = arith.constant 0 : i32
    return %arg0, %c0_i32 : i32, i32
  }
}

</mosaic_0001>

<llo_original>
// kernel: tpu_custom_call.1
$region0: #{tpu_custom_call.1}
  #allocation0 [shape = 'u32[]', space=smem, size = 0x4, offset = 0x4, fixed_abs, tag = 'smem constant byte address 0x4 - core index']
  #allocation1 [shape = 'u32[144,128]{1,0:T(1,128)}', space=vmem, size = 0x12000, scoped, tag = 'internal scratch']
  %s0 = inlined_call_operand.vmem [shape: bf16[160,32], index: 0, kind: input, shape index: {}]
  %s1 = inlined_call_operand.vmem [shape: bf16[32,32], index: 1, kind: input, shape index: {}]
  %s2 = inlined_call_operand.vmem [shape: f32[1,32], index: 2, kind: input, shape index: {}]
  %s3 = inlined_call_operand.vmem [shape: f32[160,1], index: 3, kind: input, shape index: {}]
  %s4 = inlined_call_operand.vmem [shape: bf16[160,32], index: 4, kind: output, shape index: {}]
  %s5 = sld [smem:[#allocation0]]
  $region49: #{tpu_custom_call.1} parent=0
    _
  %s7 = ssub.s32 1, %s5
  %s8 = scalar_select 0, %s7, %s5
  loop: start=0, step=1, limit=4
  $region2: #{tpu_custom_call.1} parent=0 // loop_pre_header
    _
  $region3: #{tpu_custom_call.1} parent=0 // loop_header
    %s10 = sphi 0, %s14
    %p11 = scmp.ge.s32.totalorder %s10, 4
    %s20 = sphi 0, %s22
    %s23 = sphi 0, %s20
    %s24 = sphi 0, %s23
    %s40 = sphi 0, %s24
    %s44 = sphi 0, %s44
    %s46 = sphi 0, %s44
    %s47 = sphi 0, %s46
    %s61 = sphi 0, %s47
    %s65 = sphi 0, %s65
    %s67 = sphi 0, %s65
    %s68 = sphi 0, %s67
    %s82 = sphi 0, %s68
    %s88 = sphi 0, %s90
    %s91 = sphi 0, %s88
    %s92 = sphi 0, %s91
    %s108 = sphi 0, %s92
    %s114 = sphi 0, %s116
    %s117 = sphi 0, %s114
    %s118 = sphi 0, %s117
    %s134 = sphi 0, %s118
  $region4: #{tpu_custom_call.1} parent=0 // loop_header_branch
    %13 = sbr.rel (%p11) target = $region8
  $region5: #{tpu_custom_call.1} parent=0 // loop_body
    %s15 = ssub.s32 %s10, 1
    %s16 = ssub.s32 %s10, 2
    %s17 = sadd.s32 %s10, 1
    %s18 = ssub.s32 %s10, %s17
    %p19 = scmp.eq.s32.totalorder %s18, 0
    %s21 = sadd.s32 %s20, 1
    %s22 = scalar_select %p19, %s20, %s21
    %p25 = pneg %p19
    %p26 = scmp.eq.s32.totalorder %s10, 1
    %p27 = por %p25, %p26
    %p28 = scmp.ne.s32.totalorder %s20, %s23
    %p29 = scmp.eq.s32.totalorder %s10, 0
    %p30 = por %p28, %p29
    %p31 = scmp.ne.s32.totalorder %s20, %s23
    %p32 = scmp.eq.s32.totalorder %s15, 1
    %p33 = por %p31, %p32
    %p34 = scmp.ne.s32.totalorder %s23, %s24
    %p35 = scmp.eq.s32.totalorder %s15, 0
    %p36 = por %p34, %p35
    %p37 = scmp.ne.s32.totalorder %s23, %s24
    %p38 = scmp.eq.s32.totalorder %s16, 1
    %p39 = por %p37, %p38
    %p41 = scmp.ne.s32.totalorder %s24, %s40
    %p42 = scmp.eq.s32.totalorder %s16, 0
    %p43 = por %p41, %p42
    %s45 = sadd.s32 %s44, 1
    %p48 = scmp.eq.s32.totalorder %s10, 1
    %p49 = scmp.ne.s32.totalorder %s44, %s46
    %p50 = scmp.eq.s32.totalorder %s10, 0
    %p51 = por %p49, %p50
    %p52 = scmp.ne.s32.totalorder %s44, %s46
    %p53 = scmp.eq.s32.totalorder %s15, 1
    %p54 = por %p52, %p53
    %p55 = scmp.ne.s32.totalorder %s46, %s47
    %p56 = scmp.eq.s32.totalorder %s15, 0
    %p57 = por %p55, %p56
    %p58 = scmp.ne.s32.totalorder %s46, %s47
    %p59 = scmp.eq.s32.totalorder %s16, 1
    %p60 = por %p58, %p59
    %p62 = scmp.ne.s32.totalorder %s47, %s61
    %p63 = scmp.eq.s32.totalorder %s16, 0
    %p64 = por %p62, %p63
    %s66 = sadd.s32 %s65, 1
    %p69 = scmp.eq.s32.totalorder %s10, 1
    %p70 = scmp.ne.s32.totalorder %s65, %s67
    %p71 = scmp.eq.s32.totalorder %s10, 0
    %p72 = por %p70, %p71
    %p73 = scmp.ne.s32.totalorder %s65, %s67
    %p74 = scmp.eq.s32.totalorder %s15, 1
    %p75 = por %p73, %p74
    %p76 = scmp.ne.s32.totalorder %s67, %s68
    %p77 = scmp.eq.s32.totalorder %s15, 0
    %p78 = por %p76, %p77
    %p79 = scmp.ne.s32.totalorder %s67, %s68
    %p80 = scmp.eq.s32.totalorder %s16, 1
    %p81 = por %p79, %p80
    %p83 = scmp.ne.s32.totalorder %s68, %s82
    %p84 = scmp.eq.s32.totalorder %s16, 0
    %p85 = por %p83, %p84
    %s86 = ssub.s32 %s10, %s17
    %p87 = scmp.eq.s32.totalorder %s86, 0
    %s89 = sadd.s32 %s88, 1
    %s90 = scalar_select %p87, %s88, %s89
    %p93 = pneg %p87
    %p94 = scmp.eq.s32.totalorder %s10, 1
    %p95 = por %p93, %p94
    %p96 = scmp.ne.s32.totalorder %s88, %s91
    %p97 = scmp.eq.s32.totalorder %s10, 0
    %p98 = por %p96, %p97
    %p99 = scmp.ne.s32.totalorder %s88, %s91
    %p100 = scmp.eq.s32.totalorder %s15, 1
    %p101 = por %p99, %p100
    %p102 = scmp.ne.s32.totalorder %s91, %s92
    %p103 = scmp.eq.s32.totalorder %s15, 0
    %p104 = por %p102, %p103
    %p105 = scmp.ne.s32.totalorder %s91, %s92
    %p106 = scmp.eq.s32.totalorder %s16, 1
    %p107 = por %p105, %p106
    %p109 = scmp.ne.s32.totalorder %s92, %s108
    %p110 = scmp.eq.s32.totalorder %s16, 0
    %p111 = por %p109, %p110
    %s112 = ssub.s32 %s10, %s17
    %p113 = scmp.eq.s32.totalorder %s112, 0
    %s115 = sadd.s32 %s114, 1
    %s116 = scalar_select %p113, %s114, %s115
    %p119 = pneg %p113
    %p120 = scmp.eq.s32.totalorder %s10, 1
    %p121 = por %p119, %p120
    %p122 = scmp.ne.s32.totalorder %s114, %s117
    %p123 = scmp.eq.s32.totalorder %s10, 0
    %p124 = por %p122, %p123
    %p125 = scmp.ne.s32.totalorder %s114, %s117
    %p126 = scmp.eq.s32.totalorder %s15, 1
    %p127 = por %p125, %p126
    %p128 = scmp.ne.s32.totalorder %s117, %s118
    %p129 = scmp.eq.s32.totalorder %s15, 0
    %p130 = por %p128, %p129
    %p131 = scmp.ne.s32.totalorder %s117, %s118
    %p132 = scmp.eq.s32.totalorder %s16, 1
    %p133 = por %p131, %p132
    %p135 = scmp.ne.s32.totalorder %s118, %s134
    %p136 = scmp.eq.s32.totalorder %s16, 0
    %p137 = por %p135, %p136
    %p138 = scmp.le.s32.totalorder 1, %s10
    %p139 = scmp.lt.s32.totalorder %s10, 3
    %p140 = pnand %p138, %p139
    %p141 = pneg %p140
    // Predicated region
    $region9: #{tpu_custom_call.1} parent=5 // pred_check
      _
    $region10: #{tpu_custom_call.1} parent=5 // pred_check_branch
      %143 = sbr.rel (%p140) target = $region12
    $region11: #{tpu_custom_call.1} parent=5 // pred_region
      %s144 = ssub.s32 %s10, 1
      // Predicated region
      $region13: #{tpu_custom_call.1} parent=11 // pred_check
        %p145 = pneg %p57
      $region14: #{tpu_custom_call.1} parent=11 // pred_check_branch
        %147 = sbr.rel (%p145) target = $region16
      $region15: #{tpu_custom_call.1} parent=11 // pred_region
        _
      $region16: #{tpu_custom_call.1} parent=11 // pred_fallthru
        _
      // Predicated region
      $region17: #{tpu_custom_call.1} parent=11 // pred_check
        %p148 = pneg %p78
      $region18: #{tpu_custom_call.1} parent=11 // pred_check_branch
        %150 = sbr.rel (%p148) target = $region20
      $region19: #{tpu_custom_call.1} parent=11 // pred_region
        _
      $region20: #{tpu_custom_call.1} parent=11 // pred_fallthru
        _
    $region12: #{tpu_custom_call.1} parent=5 // pred_fallthru
      _
    %p151 = scmp.lt.s32.totalorder %s10, 2
    // Predicated region
    $region21: #{tpu_custom_call.1} parent=5 // pred_check
      %p152 = pneg %p151
    $region22: #{tpu_custom_call.1} parent=5 // pred_check_branch
      %154 = sbr.rel (%p152) target = $region24
    $region23: #{tpu_custom_call.1} parent=5 // pred_region
      // Predicated region
      $region25: #{tpu_custom_call.1} parent=23 // pred_check
        %p155 = pneg %p30
      $region26: #{tpu_custom_call.1} parent=23 // pred_check_branch
        %157 = sbr.rel (%p155) target = $region28
      $region27: #{tpu_custom_call.1} parent=23 // pred_region
        %s158 = smul.u32 10, %s10
        %p159 = scmp.lt.s32.totalorder %s158, 19
        %s160 = scalar_select %p159, %s158, 19
        %s161 = smul.addr %s160, 4
        %s162 = scalar_lea.vmem %s0, %s161
        %s163 = smul.u32 10, %s10
      $region28: #{tpu_custom_call.1} parent=23 // pred_fallthru
        _
      // Predicated region
      $region29: #{tpu_custom_call.1} parent=23 // pred_check
        %p164 = pneg %p98
      $region30: #{tpu_custom_call.1} parent=23 // pred_check_branch
        %166 = sbr.rel (%p164) target = $region32
      $region31: #{tpu_custom_call.1} parent=23 // pred_region
        %s167 = smul.u32 10, %s10
        %p168 = scmp.lt.s32.totalorder %s167, 19
        %s169 = scalar_select %p168, %s167, 19
        %s170 = smul.addr %s169, 8
        %s171 = scalar_lea.vmem %s3, %s170
        %s172 = smul.u32 10, %s10
      $region32: #{tpu_custom_call.1} parent=23 // pred_fallthru
        _
    $region24: #{tpu_custom_call.1} parent=5 // pred_fallthru
      _
    %p173 = scmp.le.s32.totalorder 1, %s10
    %p174 = scmp.lt.s32.totalorder %s10, 3
    %p175 = pnand %p173, %p174
    %p176 = pneg %p175
    // Predicated region
    $region33: #{tpu_custom_call.1} parent=5 // pred_check
      _
    $region34: #{tpu_custom_call.1} parent=5 // pred_check_branch
      %178 = sbr.rel (%p175) target = $region36
    $region35: #{tpu_custom_call.1} parent=5 // pred_region
      %s179 = ssub.s32 %s10, 1
      %s180 = smul.u32 10, %s15
      %p181 = scmp.lt.s32.totalorder %s180, 19
      %s182 = scalar_select %p181, %s180, 19
      %s183 = smul.addr %s182, 4
      %s184 = scalar_lea.vmem %s0, %s183
      %p185 = pneg %p36
      %p186 = pneg %p33
      %p187 = pneg %p57
      %p188 = pneg %p54
      %p189 = pneg %p78
      %p190 = pneg %p75
      %s191 = smul.u32 10, %s15
      %p192 = scmp.lt.s32.totalorder %s191, 19
      %s193 = scalar_select %p192, %s191, 19
      %s194 = smul.addr %s193, 8
      %s195 = scalar_lea.vmem %s3, %s194
      %p196 = pneg %p104
      %p197 = pneg %p101
      %p198 = pneg %p130
      %p199 = pneg %p127
      %s200 = smul.u32 10, %s15
      %p201 = scmp.lt.s32.totalorder %s200, 19
      %s202 = scalar_select %p201, %s200, 19
      %s203 = smul.addr %s202, 4
      %s204 = scalar_lea.vmem %s4, %s203
      %s205 = smul.u32 10, %s15
      %p206 = scmp.lt.s32.totalorder %s205, 19
      %s207 = scalar_select %p206, %s205, 19
      %s208 = smul.addr %s207, 4
      %s209 = scalar_lea.vmem %s0, %s208
      %s210 = smul.u32 10, %s15
      %s211 = smul.u32 10, %s15
      %p212 = scmp.lt.s32.totalorder %s211, 19
      %s213 = scalar_select %p212, %s211, 19
      %s214 = smul.addr %s213, 8
      %s215 = scalar_lea.vmem %s3, %s214
      %s216 = smul.u32 10, %s15
      %s217 = smul.u32 10, %s15
      %p218 = scmp.lt.s32.totalorder %s217, 19
      %s219 = scalar_select %p218, %s217, 19
      %s220 = smul.addr %s219, 4
      %s221 = scalar_lea.vmem %s4, %s220
      %s222 = smul.u32 10, %s15
      %v224 = vld [vmem:[%s209] sm:$0xf]
      %v225 = vld [vmem:[%s209 + $0x4] sm:$0xf]
      %v226 = vld [vmem:[%s209 + $0x8] sm:$0xf]
      %v227 = vld [vmem:[%s209 + $0xc] sm:$0xf]
      %v228 = vld [vmem:[%s209 + $0x10] sm:$0xf]
      %v229 = vld [vmem:[%s209 + $0x14] sm:$0xf]
      %v230 = vld [vmem:[%s209 + $0x18] sm:$0xf]
      %v231 = vld [vmem:[%s209 + $0x1c] sm:$0xf]
      %v232 = vld [vmem:[%s209 + $0x20] sm:$0xf]
      %v233 = vld [vmem:[%s209 + $0x24] sm:$0xf]
      %v234 = vld [vmem:[%s1] sm:$0xf]
      %v235 = vld [vmem:[%s1 + $0x4] sm:$0xf]
      %v236 = vld [vmem:[%s1 + $0x8] sm:$0xf]
      %v237 = vld [vmem:[%s1 + $0xc] sm:$0xf]
      %v238 = vld [vmem:[%s2] sm:$0x1]
      %v240 = vlaneseq
      %v241 = vshrl.u32 %v240, 7
      %v242 = vsub.s32 0, %v241
      %v243 = vrot.slane %v238, %v242
      %v255 = vunpack.c.l.b16 %v224
      %v256 = vunpack.c.l.b16 %v225
      %v257 = vunpack.c.l.b16 %v226
      %v258 = vunpack.c.l.b16 %v227
      %v259 = vunpack.c.l.b16 %v228
      %v260 = vunpack.c.l.b16 %v229
      %v261 = vunpack.c.l.b16 %v230
      %v262 = vunpack.c.l.b16 %v231
      %v263 = vunpack.c.l.b16 %v232
      %v264 = vunpack.c.l.b16 %v233
      %v265 = vpack.c.b16 %v256, %v255
      %v266 = vpack.c.b16 %v258, %v257
      %v267 = vpack.c.b16 %v260, %v259
      %v268 = vpack.c.b16 %v262, %v261
      %v269 = vpack.c.b16 %v264, %v263
      %v274 = vunpack.c.l.b16 %v234
      %v275 = vunpack.c.l.b16 %v235
      %v276 = vunpack.c.l.b16 %v236
      %v277 = vunpack.c.l.b16 %v237
      %v278 = vpack.c.b16 %v275, %v274
      %v279 = vpack.c.b16 %v277, %v276
      %vm282 = vcmask 261120
      %v284 = vsel %vm282, %v265, 0
      %v287 = vsel %vm282, %v266, 0
      %v290 = vsel %vm282, %v267, 0
      %v293 = vsel %vm282, %v268, 0
      %v296 = vsel %vm282, %v269, 0
      %298 = vmatprep.subr.bf16.mxu0 0
      %299 = vmatpush1.bf16.msra.mxu0 %v278
      %300 = vmatprep.subr.bf16.mxu0 0
      %301 = vmatpush1.bf16.msra.mxu0 %v279
      %302 = vmatprep.subr.bf16.mxu0 0
      %303 = vmatpush1.bf16.msra.mxu0 0
      %304 = vmatprep.subr.bf16.mxu0 0
      %305 = vmatpush1.bf16.msra.mxu0 0
      %306 = vmatprep.subr.bf16.mxu0 0
      %307 = vmatpush1.bf16.msra.mxu0 0
      %308 = vmatprep.subr.bf16.mxu0 0
      %309 = vmatpush1.bf16.msra.mxu0 0
      %310 = vmatprep.subr.bf16.mxu0 0
      %311 = vmatpush1.bf16.msra.mxu0 0
      %312 = vmatprep.subr.bf16.mxu0 0
      %313 = vmatpush1.bf16.msra.mxu0 0
      %314 = vmatprep.subr.bf16.mxu0 0
      %315 = vmatpush1.bf16.msra.mxu0 0
      %316 = vmatprep.subr.bf16.mxu0 0
      %317 = vmatpush1.bf16.msra.mxu0 0
      %318 = vmatprep.subr.bf16.mxu0 0
      %319 = vmatpush1.bf16.msra.mxu0 0
      %320 = vmatprep.subr.bf16.mxu0 0
      %321 = vmatpush1.bf16.msra.mxu0 0
      %322 = vmatprep.subr.bf16.mxu0 0
      %323 = vmatpush1.bf16.msra.mxu0 0
      %324 = vmatprep.subr.bf16.mxu0 0
      %325 = vmatpush1.bf16.msra.mxu0 0
      %326 = vmatprep.subr.bf16.mxu0 0
      %327 = vmatpush1.bf16.msra.mxu0 0
      %328 = vmatprep.subr.bf16.mxu0 0
      %329 = vmatpush1.bf16.msra.mxu0 0
      %330 = vmatprep.mubr.bf16.mxu0 0
      %331 = vmatmul.mubr.bf16.gmra.mrb[0].mxu0 %v284
      %v332 = vpop.f32.mrb[0].mxu0
      %v333 = vadd.f32 %v243, %v332
      %v334 = vpop.f32.mrb[0].mxu0
      %v335 = vpop.f32.mrb[0].mxu0
      %v336 = vadd.f32 %v243, %v335
      %v337 = vpop.f32.mrb[0].mxu0
      %338 = vmatprep.mubr.bf16.mxu0 0
      %339 = vmatmul.mubr.bf16.gmra.mrb[0].mxu0 %v287
      %v340 = vpop.f32.mrb[0].mxu0
      %v341 = vadd.f32 %v243, %v340
      %v342 = vpop.f32.mrb[0].mxu0
      %v343 = vpop.f32.mrb[0].mxu0
      %v344 = vadd.f32 %v243, %v343
      %v345 = vpop.f32.mrb[0].mxu0
      %346 = vmatprep.mubr.bf16.mxu0 0
      %347 = vmatmul.mubr.bf16.gmra.mrb[0].mxu0 %v290
      %v348 = vpop.f32.mrb[0].mxu0
      %v349 = vadd.f32 %v243, %v348
      %v350 = vpop.f32.mrb[0].mxu0
      %v351 = vpop.f32.mrb[0].mxu0
      %v352 = vadd.f32 %v243, %v351
      %v353 = vpop.f32.mrb[0].mxu0
      %354 = vmatprep.mubr.bf16.mxu0 0
      %355 = vmatmul.mubr.bf16.gmra.mrb[0].mxu0 %v293
      %v356 = vpop.f32.mrb[0].mxu0
      %v357 = vadd.f32 %v243, %v356
      %v358 = vpop.f32.mrb[0].mxu0
      %v359 = vpop.f32.mrb[0].mxu0
      %v360 = vadd.f32 %v243, %v359
      %v361 = vpop.f32.mrb[0].mxu0
      %362 = vmatprep.mubr.bf16.mxu0 0
      %363 = vmatmul.mubr.bf16.gmra.mrb[0].mxu0 %v296
      %v364 = vpop.f32.mrb[0].mxu0
      %v365 = vadd.f32 %v243, %v364
      %v366 = vpop.f32.mrb[0].mxu0
      %v367 = vpop.f32.mrb[0].mxu0
      %v368 = vadd.f32 %v243, %v367
      %v369 = vpop.f32.mrb[0].mxu0
      %370 = vdwg.mxu0
      %v371 = vld [vmem:[%s215] sm:$0xff]
      %v372 = vld [vmem:[%s215 + $0x8] sm:$0xff]
      %v373 = vld [vmem:[%s215 + $0x10] sm:$0xff]
      %v374 = vld [vmem:[%s215 + $0x18] sm:$0xff]
      %v375 = vld [vmem:[%s215 + $0x20] sm:$0xff]
      %v376 = vld [vmem:[%s215 + $0x28] sm:$0xff]
      %v377 = vld [vmem:[%s215 + $0x30] sm:$0xff]
      %v378 = vld [vmem:[%s215 + $0x38] sm:$0xff]
      %v379 = vld [vmem:[%s215 + $0x40] sm:$0xff]
      %v380 = vld [vmem:[%s215 + $0x48] sm:$0xff]
      %382 = vset.pattern.permute.xlu0 0
      %383 = vperm.xlu0 %382, %v371
      %v384 = vpop.permute.xlu0 %383
      %387 = vset.pattern.permute.xlu0 0
      %388 = vperm.xlu0 %387, %v372
      %v389 = vpop.permute.xlu0 %388
      %392 = vset.pattern.permute.xlu0 0
      %393 = vperm.xlu0 %392, %v373
      %v394 = vpop.permute.xlu0 %393
      %397 = vset.pattern.permute.xlu0 0
      %398 = vperm.xlu0 %397, %v374
      %v399 = vpop.permute.xlu0 %398
      %402 = vset.pattern.permute.xlu0 0
      %403 = vperm.xlu0 %402, %v375
      %v404 = vpop.permute.xlu0 %403
      %407 = vset.pattern.permute.xlu0 0
      %408 = vperm.xlu0 %407, %v376
      %v409 = vpop.permute.xlu0 %408
      %412 = vset.pattern.permute.xlu0 0
      %413 = vperm.xlu0 %412, %v377
      %v414 = vpop.permute.xlu0 %413
      %417 = vset.pattern.permute.xlu0 0
      %418 = vperm.xlu0 %417, %v378
      %v419 = vpop.permute.xlu0 %418
      %422 = vset.pattern.permute.xlu0 0
      %423 = vperm.xlu0 %422, %v379
      %v424 = vpop.permute.xlu0 %423
      %427 = vset.pattern.permute.xlu0 0
      %428 = vperm.xlu0 %427, %v380
      %v429 = vpop.permute.xlu0 %428
      %v431 = vmul.f32 %v333, %v384
      %v432 = vmul.f32 %v336, %v389
      %v433 = vmul.f32 %v341, %v394
      %v434 = vmul.f32 %v344, %v399
      %v435 = vmul.f32 %v349, %v404
      %v436 = vmul.f32 %v352, %v409
      %v437 = vmul.f32 %v357, %v414
      %v438 = vmul.f32 %v360, %v419
      %v439 = vmul.f32 %v365, %v424
      %v440 = vmul.f32 %v368, %v429
      %v441 = vpack.c.bf16 %v432, %v431
      %v442 = vpack.c.bf16 %v434, %v433
      %v443 = vpack.c.bf16 %v436, %v435
      %v444 = vpack.c.bf16 %v438, %v437
      %v445 = vpack.c.bf16 %v440, %v439
      %v451 = vunpack.c.l.b16 %v441
      %v452 = vunpack.c.h.b16 %v441
      %v453 = vunpack.c.l.b16 %v442
      %v454 = vunpack.c.h.b16 %v442
      %v455 = vunpack.c.l.b16 %v443
      %v456 = vunpack.c.h.b16 %v443
      %v457 = vunpack.c.l.b16 %v444
      %v458 = vunpack.c.h.b16 %v444
      %v459 = vunpack.c.l.b16 %v445
      %v460 = vunpack.c.h.b16 %v445
      %v461 = vpack.c.b16 %v451, %v451
      %v462 = vpack.c.b16 %v452, %v452
      %v463 = vpack.c.b16 %v453, %v453
      %v464 = vpack.c.b16 %v454, %v454
      %v465 = vpack.c.b16 %v455, %v455
      %v466 = vpack.c.b16 %v456, %v456
      %v467 = vpack.c.b16 %v457, %v457
      %v468 = vpack.c.b16 %v458, %v458
      %v469 = vpack.c.b16 %v459, %v459
      %v470 = vpack.c.b16 %v460, %v460
      %vm481 = vcmask 257024
      %482 = vst.msk [vmem:[%s221] sm:$0xf] %vm481, %v461
      %483 = vst.msk [vmem:[%s221 + $0x4] sm:$0xf] %vm481, %v462
      %484 = vst.msk [vmem:[%s221 + $0x8] sm:$0xf] %vm481, %v463
      %485 = vst.msk [vmem:[%s221 + $0xc] sm:$0xf] %vm481, %v464
      %486 = vst.msk [vmem:[%s221 + $0x10] sm:$0xf] %vm481, %v465
      %487 = vst.msk [vmem:[%s221 + $0x14] sm:$0xf] %vm481, %v466
      %488 = vst.msk [vmem:[%s221 + $0x18] sm:$0xf] %vm481, %v467
      %489 = vst.msk [vmem:[%s221 + $0x1c] sm:$0xf] %vm481, %v468
      %490 = vst.msk [vmem:[%s221 + $0x20] sm:$0xf] %vm481, %v469
      %491 = vst.msk [vmem:[%s221 + $0x24] sm:$0xf] %vm481, %v470
      %s492 = smul.u32 10, %s15
      %p493 = scmp.lt.s32.totalorder %s492, 19
      %s494 = scalar_select %p493, %s492, 19
      %s495 = smul.addr %s494, 4
      %s496 = scalar_lea.vmem %s4, %s495
      // Predicated region
      $region37: #{tpu_custom_call.1} parent=35 // pred_check
        %p497 = pneg %p127
      $region38: #{tpu_custom_call.1} parent=35 // pred_check_branch
        %499 = sbr.rel (%p497) target = $region40
      $region39: #{tpu_custom_call.1} parent=35 // pred_region
        %s500 = smul.u32 10, %s15
      $region40: #{tpu_custom_call.1} parent=35 // pred_fallthru
        _
    $region36: #{tpu_custom_call.1} parent=5 // pred_fallthru
      _
    %p501 = scmp.le.s32.totalorder 2, %s10
    // Predicated region
    $region41: #{tpu_custom_call.1} parent=5 // pred_check
      %p502 = pneg %p501
    $region42: #{tpu_custom_call.1} parent=5 // pred_check_branch
      %504 = sbr.rel (%p502) target = $region44
    $region43: #{tpu_custom_call.1} parent=5 // pred_region
      %s505 = ssub.s32 %s10, 2
      // Predicated region
      $region45: #{tpu_custom_call.1} parent=43 // pred_check
        %p506 = pneg %p133
      $region46: #{tpu_custom_call.1} parent=43 // pred_check_branch
        %508 = sbr.rel (%p506) target = $region48
      $region47: #{tpu_custom_call.1} parent=43 // pred_region
        %s509 = smul.u32 10, %s16
        %p510 = scmp.lt.s32.totalorder %s509, 19
        %s511 = scalar_select %p510, %s509, 19
        %s512 = smul.addr %s511, 4
        %s513 = scalar_lea.vmem %s4, %s512
      $region48: #{tpu_custom_call.1} parent=43 // pred_fallthru
        _
    $region44: #{tpu_custom_call.1} parent=5 // pred_fallthru
      _
  $region6: #{tpu_custom_call.1} parent=0 // loop_footer
    %s14 = sadd.s32 1, %s10
  $region7: #{tpu_custom_call.1} parent=0 // loop_footer_branch
    %9 = sbr.rel target = $region3
  $region8: #{tpu_custom_call.1} parent=0 // loop_exit
    _

</llo_original>
